<compile_context>
chip_gen: v7x
topology: tpu7x:2x2x1
jax: 0.10.0
libtpu: 0.0.40
codegen_flags: <defaults>
</compile_context>

<pallas_src>
import functools

import jax
import jax.numpy as jnp
from jax.experimental import pallas as pl
from jax.experimental.pallas import tpu as pltpu

# Finite "-inf": keeps exp()/max() NaN-free even if a tile were ever fully masked.
_NEG_BIG = -1e30


def _gated_attention_kernel(x_ref, wf_hbm, bf_ref, wa_ref, wc_ref, scal_ref,
                            inst_ref, out_ref,
                            wf_vmem, wf_sem, m_sc, l_sc, acc_sc,
                            *, d_pad, tn, n_valid):
    i = pl.program_id(0)

    @pl.when(i == 0)
    def _init():
        # Resident fused weights: one DMA for the whole grid, single-buffered in
        # VMEM scratch (a BlockSpec input would allocate 2 buffers even with a
        # constant index_map).
        cp = pltpu.make_async_copy(wf_hbm, wf_vmem, wf_sem)
        cp.start()
        m_sc[...] = jnp.full_like(m_sc, _NEG_BIG)
        l_sc[...] = jnp.zeros_like(l_sc)
        acc_sc[...] = jnp.zeros_like(acc_sc)
        cp.wait()

    h = x_ref[...]                                           # (tn, L), streaming dtype

    # Fused projection: one MXU pass of H against [Wv | Wu | Wi] (lane-aligned,
    # zero-padded sections), f32 accumulation, fused f32 biases.
    p = jnp.dot(h, wf_vmem[...], preferred_element_type=jnp.float32) + bf_ref[...]
    a_v = jnp.tanh(p[:, :d_pad])                             # (tn, D_pad)
    a_u = jax.nn.sigmoid(p[:, d_pad:2 * d_pad])              # (tn, D_pad)
    inst_col = p[:, 2 * d_pad:2 * d_pad + 1]                 # (tn, 1), bias included

    # K == 1 attention score: broadcast-mul + lane-sum (VPU/XLU); padded lanes of
    # w_a are zero so they contribute nothing.
    s_col = jnp.sum(a_v * a_u * wa_ref[...], axis=-1, keepdims=True) + scal_ref[0]

    # Single fused sublane->lane relayout for both narrow columns.
    rows = jnp.transpose(jnp.concatenate([inst_col, s_col], axis=1))   # (2, tn)
    inst_ref[...] = rows[0:1, :].astype(inst_ref.dtype)
    s_row = rows[1:2, :]                                     # (1, tn)

    # Mask padded tail instances so they get zero attention weight.
    lane = jax.lax.broadcasted_iota(jnp.int32, (1, tn), 1)
    s_row = jnp.where(i * tn + lane < n_valid, s_row, _NEG_BIG)

    # Online (flash-style) softmax accumulation across the instance grid axis.
    m_prev = m_sc[...]
    m_new = jnp.maximum(m_prev, jnp.max(s_row, axis=-1, keepdims=True))
    alpha = jnp.exp(m_prev - m_new)                          # finite (no -inf - -inf)
    p_row = jnp.exp(s_row - m_new)                           # (1, tn)
    l_sc[...] = alpha * l_sc[...] + jnp.sum(p_row, axis=-1, keepdims=True)
    acc_sc[...] = alpha * acc_sc[...] + jnp.dot(
        p_row.astype(h.dtype), h, preferred_element_type=jnp.float32)   # (1, L)
    m_sc[...] = m_new

    @pl.when(i == pl.num_programs(0) - 1)
    def _finalize():
        m_bag = acc_sc[...] / l_sc[...]                      # (1, L) == M (K == 1)
        # K == 1 classifier: broadcast-mul + lane-sum instead of a width-1 matmul.
        out = jnp.sum(m_bag * wc_ref[...], axis=-1, keepdims=True) + scal_ref[1]
        out_ref[...] = out.astype(out_ref.dtype)


def _pad_cols(a, width):
    return jnp.pad(a, ((0, 0), (0, width - a.shape[1])))


def gated_attention(x, params, *, tn=2048, compute_dtype=None):
    N, L = x.shape
    K = params["w_inst"].shape[0]
    D = params["w_v"].shape[0]
    # The torch classifier Linear(L*K, 1) applied to M is only shape-valid for K == 1.
    assert K == 1, "GatedAttention requires K == 1 (as in the PyTorch module)."
    assert params["w_c"].shape == (1, L * K)

    if compute_dtype is None:
        compute_dtype = x.dtype
    compute_dtype = jnp.dtype(compute_dtype)
    f32 = jnp.float32

    # Lane-align the fused projection width: pad D (and the K-wide inst section)
    # to multiples of 128 with zero columns.
    d_pad = max(128, ((D + 127) // 128) * 128)
    k_pad = 128
    w_width = 2 * d_pad + k_pad

    # Host-side weight fusion / pre-transpose (free): (L, W) = [Wv | Wu | Wi].
    w_fused = jnp.concatenate(
        [_pad_cols(params["w_v"].T.astype(f32), d_pad),
         _pad_cols(params["w_u"].T.astype(f32), d_pad),
         _pad_cols(params["w_inst"].T.astype(f32), k_pad)],
        axis=1).astype(compute_dtype)                       # streamed to the MXU
    b_fused = jnp.concatenate(
        [_pad_cols(params["b_v"].reshape(1, D).astype(f32), d_pad),
         _pad_cols(params["b_u"].reshape(1, D).astype(f32), d_pad),
         _pad_cols(params["b_inst"].reshape(1, K).astype(f32), k_pad)],
        axis=1)                                             # f32 (added to f32 acc)
    w_a = _pad_cols(params["w_a"].reshape(1, D).astype(f32), d_pad)   # f32
    w_c = params["w_c"].reshape(1, L).astype(f32)                      # f32
    scalars = jnp.concatenate(
        [params["b_a"].reshape(-1), params["b_c"].reshape(-1)]).astype(f32)

    # Instance-axis tiling.
    if N <= tn:
        tn_eff = max(8, ((N + 7) // 8) * 8)      # single tile, sublane aligned
    else:
        assert tn % 128 == 0, "multi-tile TN must be lane-dense (multiple of 128)"
        tn_eff = tn
    num_tiles = pl.cdiv(N, tn_eff)
    n_pad = num_tiles * tn_eff
    x_stream = x.astype(compute_dtype)
    if n_pad != N:
        x_stream = jnp.pad(x_stream, ((0, n_pad - N), (0, 0)))

    kernel = functools.partial(_gated_attention_kernel,
                               d_pad=d_pad, tn=tn_eff, n_valid=N)

    c_item = compute_dtype.itemsize
    flops = 2 * n_pad * L * w_width + 2 * n_pad * L
    transcendentals = n_pad * (2 * d_pad + 1)
    bytes_accessed = (n_pad * L * c_item + L * w_width * c_item
                      + (w_width + d_pad + L + 2) * 4 + n_pad * 4 + 4)
    vmem_bytes = (2 * tn_eff * L * c_item          # H tiles, double-buffered
                  + L * w_width * c_item           # resident fused weights (1 copy)
                  + 2 * (w_width + d_pad + L) * 4  # small f32 rows, double-buffered
                  + 2 * tn_eff * 4                 # inst-out blocks (f32)
                  + (L + 2) * 4 + 8)               # online-softmax scratch + logit
    vmem_limit = int(min(128 * 1024 * 1024, max(32 * 1024 * 1024, 2 * vmem_bytes)))

    inst_pad, out = pl.pallas_call(
        kernel,
        out_shape=(jax.ShapeDtypeStruct((1, n_pad), jnp.float32),   # lane-dense (K, N_pad)
                   jax.ShapeDtypeStruct((K, 1), jnp.float32)),
        grid_spec=pltpu.PrefetchScalarGridSpec(
            num_scalar_prefetch=0,
            grid=(num_tiles,),
            in_specs=[
                pl.BlockSpec((tn_eff, L), lambda i: (i, 0)),          # H tile (pipelined)
                pl.BlockSpec(memory_space=pl.ANY),                    # fused weights (HBM, DMA once)
                pl.BlockSpec((1, w_width), lambda i: (0, 0)),         # fused biases (f32)
                pl.BlockSpec((1, d_pad), lambda i: (0, 0)),           # attention weights row (f32)
                pl.BlockSpec((1, L), lambda i: (0, 0)),               # classifier weights row (f32)
                pl.BlockSpec(memory_space=pltpu.MemorySpace.SMEM),    # [b_a, b_c] scalars
            ],
            out_specs=(
                pl.BlockSpec((1, tn_eff), lambda i: (0, i)),          # inst_out (K, N) blocks
                pl.BlockSpec((K, 1), lambda i: (0, 0)),               # bag logit (resident)
            ),
            scratch_shapes=[
                pltpu.VMEM((L, w_width), compute_dtype),  # resident fused weights
                pltpu.SemaphoreType.DMA,                  # weight-DMA semaphore
                pltpu.VMEM((1, 1), jnp.float32),          # running max
                pltpu.VMEM((1, 1), jnp.float32),          # running sum
                pltpu.VMEM((1, L), jnp.float32),          # running weighted sum of H
            ],
        ),
        compiler_params=pltpu.CompilerParams(
            dimension_semantics=("arbitrary",),
            vmem_limit_bytes=vmem_limit),
        cost_estimate=pl.CostEstimate(
            flops=int(flops),
            transcendentals=int(transcendentals),
            bytes_accessed=int(bytes_accessed)),
    )(x_stream, w_fused, b_fused, w_a, w_c, scalars)

    inst_out = inst_pad[:, :N].T                 # back to torch layout (N, K), f32
    return inst_out, out


def init_params(key, L, D, K, dtype=jnp.float32):
    # torch nn.Linear default init: U(-1/sqrt(fan_in), 1/sqrt(fan_in))
    def linear(k, fan_in, fan_out):
        kw, kb = jax.random.split(k)
        bound = 1.0 / (fan_in ** 0.5)
        w = jax.random.uniform(kw, (fan_out, fan_in), dtype, -bound, bound)
        b = jax.random.uniform(kb, (1, fan_out), dtype, -bound, bound)
        return w, b

    k0, k1, k2, k3, k4 = jax.random.split(key, 5)
    w_inst, b_inst = linear(k0, L, K)
    w_v, b_v = linear(k1, L, D)
    w_u, b_u = linear(k2, L, D)
    w_a, b_a = linear(k3, D, K)
    w_c, b_c = linear(k4, L * K, 1)
    return dict(w_inst=w_inst, b_inst=b_inst,
                w_v=w_v, b_v=b_v, w_u=w_u, b_u=b_u,
                w_a=w_a, b_a=b_a, w_c=w_c, b_c=b_c)


def gated_attention_ref(x, p):
    # pure-JAX reference mirroring the PyTorch forward
    H = x
    inst = H @ p["w_inst"].T + p["b_inst"]
    a_v = jnp.tanh(H @ p["w_v"].T + p["b_v"])
    a_u = jax.nn.sigmoid(H @ p["w_u"].T + p["b_u"])
    a = (a_v * a_u) @ p["w_a"].T + p["b_a"]
    a = jax.nn.softmax(a.T, axis=1)
    m = a @ H
    out = m @ p["w_c"].T + p["b_c"]
    return inst, out


if __name__ == "__main__":
    key = jax.random.PRNGKey(0)
    k1, k2, k3, k4 = jax.random.split(key, 4)
    K = 1

    # Case 1: tiny single-tile bag (f32).
    N1, L1, D1 = 8, 32, 16
    x1 = jax.random.normal(k1, (N1, L1), jnp.float32)
    p1 = init_params(k2, L1, D1, K)
    inst1, out1 = gated_attention(x1, p1)
    jax.block_until_ready((inst1, out1))
    inst1_r, out1_r = gated_attention_ref(x1, p1)
    assert inst1.shape == (N1, K) and out1.shape == (K, 1)
    assert jnp.allclose(inst1, inst1_r, atol=1e-4, rtol=1e-4)
    assert jnp.allclose(out1, out1_r, atol=1e-4, rtol=1e-4)

    # Case 2: multi-tile bag exercising the online-softmax grid + tail masking (f32).
    N2, L2, D2 = 300, 64, 32
    x2 = jax.random.normal(k3, (N2, L2), jnp.float32)
    p2 = init_params(k4, L2, D2, K)
    inst2, out2 = gated_attention(x2, p2, tn=128)
    jax.block_until_ready((inst2, out2))
    inst2_r, out2_r = gated_attention_ref(x2, p2)
    assert inst2.shape == (N2, K) and out2.shape == (K, 1)
    assert jnp.allclose(inst2, inst2_r, atol=1e-4, rtol=1e-4)
    assert jnp.allclose(out2, out2_r, atol=1e-4, rtol=1e-4)

    # Case 3: bf16 streaming of H and the fused weights through the MXU
    # (f32 accumulation / softmax / outputs inside the kernel).
    inst3, out3 = gated_attention(x2, p2, tn=128, compute_dtype=jnp.bfloat16)
    jax.block_until_ready((inst3, out3))
    x2_bf = x2.astype(jnp.bfloat16).astype(jnp.float32)
    inst3_r, out3_r = gated_attention_ref(x2_bf, p2)
    assert inst3.shape == (N2, K) and out3.shape == (K, 1)
    assert jnp.allclose(inst3, inst3_r, atol=5e-2, rtol=5e-2)
    assert jnp.allclose(out3, out3_r, atol=5e-2, rtol=5e-2)

    print("KERNEL_OK")
</pallas_src>

<mosaic_0001>
module attributes {stable_mosaic.version = 11 : i64} {
  func.func @_gated_attention_kernel(%arg0: i32, %arg1: memref<8x32xf32, #tpu.memory_space<vmem>>, %arg2: memref<32x384xf32, #tpu.memory_space<any>>, %arg3: memref<1x384xf32, #tpu.memory_space<vmem>>, %arg4: memref<1x128xf32, #tpu.memory_space<vmem>>, %arg5: memref<1x32xf32, #tpu.memory_space<vmem>>, %arg6: memref<2xf32, #tpu.memory_space<smem>>, %arg7: memref<1x8xf32, #tpu.memory_space<vmem>>, %arg8: memref<1x1xf32, #tpu.memory_space<vmem>>, %arg9: memref<32x384xf32, #tpu.memory_space<vmem>>, %arg10: memref<!tpu.dma_semaphore, #tpu.memory_space<semaphore_mem>>, %arg11: memref<1x1xf32, #tpu.memory_space<vmem>>, %arg12: memref<1x1xf32, #tpu.memory_space<vmem>>, %arg13: memref<1x32xf32, #tpu.memory_space<vmem>>) attributes {dimension_semantics = [#tpu.dimension_semantics<arbitrary>], iteration_bounds = array<i64: 1>, scalar_prefetch = 0 : i64, scratch_operands = 5 : i64, tpu.core_type = #tpu.core_type<tc>, window_params = [{transform_indices = @transform_0, window_bounds = array<i64: 8, 32>}, {}, {pipeline_mode = #tpu.pipeline_mode<synchronous>, transform_indices = @transform_2, window_bounds = array<i64: 1, 384>}, {pipeline_mode = #tpu.pipeline_mode<synchronous>, transform_indices = @transform_3, window_bounds = array<i64: 1, 128>}, {pipeline_mode = #tpu.pipeline_mode<synchronous>, transform_indices = @transform_4, window_bounds = array<i64: 1, 32>}, {transform_indices = @transform_5, window_bounds = array<i64: 2>}, {transform_indices = @transform_6, window_bounds = array<i64: 1, 8>}, {pipeline_mode = #tpu.pipeline_mode<synchronous>, transform_indices = @transform_7, window_bounds = array<i64: 1, 1>}]} {
    %c0_i32 = arith.constant 0 : i32
    %0 = arith.cmpi eq, %arg0, %c0_i32 : i32
    %1 = arith.extui %0 : i1 to i32
    %c0_i32_0 = arith.constant 0 : i32
    %2 = arith.cmpi ne, %1, %c0_i32_0 : i32
    scf.if %2 {
      tpu.enqueue_dma source(%arg2 : memref<32x384xf32, #tpu.memory_space<any>>) target(%arg9 : memref<32x384xf32, #tpu.memory_space<vmem>>) target_semaphore(%arg10 : memref<!tpu.dma_semaphore, #tpu.memory_space<semaphore_mem>>)
      %cst_32 = arith.constant -1.000000e+30 : f32
      %65 = vector.broadcast %cst_32 : f32 to vector<1x1xf32>
      %c0_33 = arith.constant 0 : index
      %c0_34 = arith.constant 0 : index
      %66 = vector.load %arg11[%c0_33, %c0_34] : memref<1x1xf32, #tpu.memory_space<vmem>>, vector<1x1xf32>
      tpu.vector_store %arg11[%c0_33, %c0_34], %65 {strides = array<i32>} : memref<1x1xf32, #tpu.memory_space<vmem>>, vector<1x1xf32>,
      %cst_35 = arith.constant 0.000000e+00 : f32
      %67 = vector.broadcast %cst_35 : f32 to vector<1x1xf32>
      %c0_36 = arith.constant 0 : index
      %c0_37 = arith.constant 0 : index
      %68 = vector.load %arg12[%c0_36, %c0_37] : memref<1x1xf32, #tpu.memory_space<vmem>>, vector<1x1xf32>
      tpu.vector_store %arg12[%c0_36, %c0_37], %67 {strides = array<i32>} : memref<1x1xf32, #tpu.memory_space<vmem>>, vector<1x1xf32>,
      %cst_38 = arith.constant 0.000000e+00 : f32
      %69 = vector.broadcast %cst_38 : f32 to vector<1x32xf32>
      %c0_39 = arith.constant 0 : index
      %c0_40 = arith.constant 0 : index
      %70 = vector.load %arg13[%c0_39, %c0_40] : memref<1x32xf32, #tpu.memory_space<vmem>>, vector<1x32xf32>
      tpu.vector_store %arg13[%c0_39, %c0_40], %69 {strides = array<i32>} : memref<1x32xf32, #tpu.memory_space<vmem>>, vector<1x32xf32>,
      tpu.wait_dma2 semaphore(%arg10 : memref<!tpu.dma_semaphore, #tpu.memory_space<semaphore_mem>>) src(%arg2 : memref<32x384xf32, #tpu.memory_space<any>>) dst(%arg9 : memref<32x384xf32, #tpu.memory_space<vmem>>)
    } else {
    }
    %c0 = arith.constant 0 : index
    %c0_1 = arith.constant 0 : index
    %3 = vector.load %arg1[%c0, %c0_1] : memref<8x32xf32, #tpu.memory_space<vmem>>, vector<8x32xf32>
    %c0_2 = arith.constant 0 : index
    %c0_3 = arith.constant 0 : index
    %4 = vector.load %arg9[%c0_2, %c0_3] : memref<32x384xf32, #tpu.memory_space<vmem>>, vector<32x384xf32>
    %cst = arith.constant dense<0.000000e+00> : vector<8x384xf32>
    %5 = tpu.matmul %3, %4, %cst {dimension_numbers = #tpu.dot_dimension_numbers<[1], [0], [0], [1], [0, 0, 1, 1], [], []>} : vector<8x32xf32>, vector<32x384xf32>, vector<8x384xf32> -> vector<8x384xf32>
    %c0_4 = arith.constant 0 : index
    %c0_5 = arith.constant 0 : index
    %6 = vector.load %arg3[%c0_4, %c0_5] : memref<1x384xf32, #tpu.memory_space<vmem>>, vector<1x384xf32>
    %7 = vector.broadcast %6 : vector<1x384xf32> to vector<8x384xf32>
    %8 = arith.addf %5, %7 : vector<8x384xf32>
    %9 = vector.extract_strided_slice %8 {offsets = [0, 0], sizes = [8, 128], strides = [1, 1]} : vector<8x384xf32> to vector<8x128xf32>
    %10 = math.tanh %9 : vector<8x128xf32>
    %11 = vector.extract_strided_slice %8 {offsets = [0, 128], sizes = [8, 128], strides = [1, 1]} : vector<8x384xf32> to vector<8x128xf32>
    %12 = arith.negf %11 : vector<8x128xf32>
    %13 = math.exp %12 : vector<8x128xf32>
    %cst_6 = arith.constant 1.000000e+00 : f32
    %14 = vector.broadcast %cst_6 : f32 to vector<8x128xf32>
    %15 = arith.addf %14, %13 : vector<8x128xf32>
    %16 = arith.divf %14, %15 : vector<8x128xf32>
    %17 = vector.extract_strided_slice %8 {offsets = [0, 256], sizes = [8, 1], strides = [1, 1]} : vector<8x384xf32> to vector<8x1xf32>
    %18 = arith.mulf %10, %16 : vector<8x128xf32>
    %c0_7 = arith.constant 0 : index
    %c0_8 = arith.constant 0 : index
    %19 = vector.load %arg4[%c0_7, %c0_8] : memref<1x128xf32, #tpu.memory_space<vmem>>, vector<1x128xf32>
    %20 = vector.broadcast %19 : vector<1x128xf32> to vector<8x128xf32>
    %21 = arith.mulf %18, %20 : vector<8x128xf32>
    %cst_9 = arith.constant dense<0.000000e+00> : vector<8xf32>
    %22 = vector.multi_reduction <add>, %21, %cst_9 [1] : vector<8x128xf32> to vector<8xf32>
    %23 = vector.shape_cast %22 : vector<8xf32> to vector<8x1xf32>
    %c0_10 = arith.constant 0 : index
    %24 = memref.load %arg6[%c0_10] : memref<2xf32, #tpu.memory_space<smem>>
    %25 = vector.broadcast %24 : f32 to vector<8x1xf32>
    %26 = arith.addf %23, %25 : vector<8x1xf32>
    %27 = tpu.concatenate %17, %26 in 1 : vector<8x1xf32>, vector<8x1xf32> -> vector<8x2xf32>
    %28 = tpu.transpose %27, [1, 0] : vector<8x2xf32> -> vector<2x8xf32>
    %29 = vector.extract_strided_slice %28 {offsets = [0, 0], sizes = [1, 8], strides = [1, 1]} : vector<2x8xf32> to vector<1x8xf32>
    %c0_11 = arith.constant 0 : index
    %c0_12 = arith.constant 0 : index
    %30 = vector.load %arg7[%c0_11, %c0_12] : memref<1x8xf32, #tpu.memory_space<vmem>>, vector<1x8xf32>
    tpu.vector_store %arg7[%c0_11, %c0_12], %29 {strides = array<i32>} : memref<1x8xf32, #tpu.memory_space<vmem>>, vector<1x8xf32>,
    %31 = vector.extract_strided_slice %28 {offsets = [1, 0], sizes = [1, 8], strides = [1, 1]} : vector<2x8xf32> to vector<1x8xf32>
    %32 = tpu.iota {dimensions = array<i32: 1>} : vector<1x8xi32>
    %c8_i32 = arith.constant 8 : i32
    %33 = arith.muli %arg0, %c8_i32 : i32
    %34 = vector.broadcast %33 : i32 to vector<1x8xi32>
    %35 = arith.addi %34, %32 : vector<1x8xi32>
    %c8_i32_13 = arith.constant 8 : i32
    %36 = vector.broadcast %c8_i32_13 : i32 to vector<1x8xi32>
    %37 = arith.cmpi slt, %35, %36 : vector<1x8xi32>
    %cst_14 = arith.constant -1.000000e+30 : f32
    %38 = vector.broadcast %cst_14 : f32 to vector<1x8xf32>
    %39 = arith.select %37, %31, %38 : vector<1x8xi1>, vector<1x8xf32>
    %c0_15 = arith.constant 0 : index
    %c0_16 = arith.constant 0 : index
    %40 = vector.load %arg11[%c0_15, %c0_16] : memref<1x1xf32, #tpu.memory_space<vmem>>, vector<1x1xf32>
    %cst_17 = arith.constant dense<0xFF800000> : vector<1xf32>
    %41 = vector.multi_reduction <maximumf>, %39, %cst_17 [1] : vector<1x8xf32> to vector<1xf32>
    %42 = vector.shape_cast %41 : vector<1xf32> to vector<1x1xf32>
    %43 = arith.maximumf %40, %42 : vector<1x1xf32>
    %44 = arith.subf %40, %43 : vector<1x1xf32>
    %45 = math.exp %44 : vector<1x1xf32>
    %46 = vector.broadcast %43 : vector<1x1xf32> to vector<1x8xf32>
    %47 = arith.subf %39, %46 : vector<1x8xf32>
    %48 = math.exp %47 : vector<1x8xf32>
    %c0_18 = arith.constant 0 : index
    %c0_19 = arith.constant 0 : index
    %49 = vector.load %arg12[%c0_18, %c0_19] : memref<1x1xf32, #tpu.memory_space<vmem>>, vector<1x1xf32>
    %50 = arith.mulf %45, %49 : vector<1x1xf32>
    %cst_20 = arith.constant dense<0.000000e+00> : vector<1xf32>
    %51 = vector.multi_reduction <add>, %48, %cst_20 [1] : vector<1x8xf32> to vector<1xf32>
    %52 = vector.shape_cast %51 : vector<1xf32> to vector<1x1xf32>
    %53 = arith.addf %50, %52 : vector<1x1xf32>
    %c0_21 = arith.constant 0 : index
    %c0_22 = arith.constant 0 : index
    %54 = vector.load %arg12[%c0_21, %c0_22] : memref<1x1xf32, #tpu.memory_space<vmem>>, vector<1x1xf32>
    tpu.vector_store %arg12[%c0_21, %c0_22], %53 {strides = array<i32>} : memref<1x1xf32, #tpu.memory_space<vmem>>, vector<1x1xf32>,
    %c0_23 = arith.constant 0 : index
    %c0_24 = arith.constant 0 : index
    %55 = vector.load %arg13[%c0_23, %c0_24] : memref<1x32xf32, #tpu.memory_space<vmem>>, vector<1x32xf32>
    %56 = vector.broadcast %45 : vector<1x1xf32> to vector<1x32xf32>
    %57 = arith.mulf %56, %55 : vector<1x32xf32>
    %cst_25 = arith.constant dense<0.000000e+00> : vector<1x32xf32>
    %58 = tpu.matmul %48, %3, %cst_25 {dimension_numbers = #tpu.dot_dimension_numbers<[1], [0], [0], [1], [0, 0, 1, 1], [], []>} : vector<1x8xf32>, vector<8x32xf32>, vector<1x32xf32> -> vector<1x32xf32>
    %59 = arith.addf %57, %58 : vector<1x32xf32>
    %c0_26 = arith.constant 0 : index
    %c0_27 = arith.constant 0 : index
    %60 = vector.load %arg13[%c0_26, %c0_27] : memref<1x32xf32, #tpu.memory_space<vmem>>, vector<1x32xf32>
    tpu.vector_store %arg13[%c0_26, %c0_27], %59 {strides = array<i32>} : memref<1x32xf32, #tpu.memory_space<vmem>>, vector<1x32xf32>,
    %c0_28 = arith.constant 0 : index
    %c0_29 = arith.constant 0 : index
    %61 = vector.load %arg11[%c0_28, %c0_29] : memref<1x1xf32, #tpu.memory_space<vmem>>, vector<1x1xf32>
    tpu.vector_store %arg11[%c0_28, %c0_29], %43 {strides = array<i32>} : memref<1x1xf32, #tpu.memory_space<vmem>>, vector<1x1xf32>,
    %c0_i32_30 = arith.constant 0 : i32
    %62 = arith.cmpi eq, %arg0, %c0_i32_30 : i32
    %63 = arith.extui %62 : i1 to i32
    %c0_i32_31 = arith.constant 0 : i32
    %64 = arith.cmpi ne, %63, %c0_i32_31 : i32
    scf.if %64 {
      %c0_32 = arith.constant 0 : index
      %c0_33 = arith.constant 0 : index
      %65 = vector.load %arg13[%c0_32, %c0_33] : memref<1x32xf32, #tpu.memory_space<vmem>>, vector<1x32xf32>
      %c0_34 = arith.constant 0 : index
      %c0_35 = arith.constant 0 : index
      %66 = vector.load %arg12[%c0_34, %c0_35] : memref<1x1xf32, #tpu.memory_space<vmem>>, vector<1x1xf32>
      %67 = vector.broadcast %66 : vector<1x1xf32> to vector<1x32xf32>
      %68 = arith.divf %65, %67 : vector<1x32xf32>
      %c0_36 = arith.constant 0 : index
      %c0_37 = arith.constant 0 : index
      %69 = vector.load %arg5[%c0_36, %c0_37] : memref<1x32xf32, #tpu.memory_space<vmem>>, vector<1x32xf32>
      %70 = arith.mulf %68, %69 : vector<1x32xf32>
      %cst_38 = arith.constant dense<0.000000e+00> : vector<1xf32>
      %71 = vector.multi_reduction <add>, %70, %cst_38 [1] : vector<1x32xf32> to vector<1xf32>
      %72 = vector.shape_cast %71 : vector<1xf32> to vector<1x1xf32>
      %c1 = arith.constant 1 : index
      %73 = memref.load %arg6[%c1] : memref<2xf32, #tpu.memory_space<smem>>
      %74 = vector.broadcast %73 : f32 to vector<1x1xf32>
      %75 = arith.addf %72, %74 : vector<1x1xf32>
      %c0_39 = arith.constant 0 : index
      %c0_40 = arith.constant 0 : index
      %76 = vector.load %arg8[%c0_39, %c0_40] : memref<1x1xf32, #tpu.memory_space<vmem>>, vector<1x1xf32>
      tpu.vector_store %arg8[%c0_39, %c0_40], %75 {strides = array<i32>} : memref<1x1xf32, #tpu.memory_space<vmem>>, vector<1x1xf32>,
    } else {
    }
    return
  }
  func.func @transform_0(%arg0: i32) -> (i32, i32) {
    %c0_i32 = arith.constant 0 : i32
    %c0_i32_0 = arith.constant 0 : i32
    return %arg0, %c0_i32 : i32, i32
  }
  func.func @transform_2(%arg0: i32) -> (i32, i32) {
    %c0_i32 = arith.constant 0 : i32
    %c0_i32_0 = arith.constant 0 : i32
    %c0_i32_1 = arith.constant 0 : i32
    return %c0_i32, %c0_i32_0 : i32, i32
  }
  func.func @transform_3(%arg0: i32) -> (i32, i32) {
    %c0_i32 = arith.constant 0 : i32
    %c0_i32_0 = arith.constant 0 : i32
    %c0_i32_1 = arith.constant 0 : i32
    return %c0_i32, %c0_i32_0 : i32, i32
  }
  func.func @transform_4(%arg0: i32) -> (i32, i32) {
    %c0_i32 = arith.constant 0 : i32
    %c0_i32_0 = arith.constant 0 : i32
    %c0_i32_1 = arith.constant 0 : i32
    return %c0_i32, %c0_i32_0 : i32, i32
  }
  func.func @transform_5(%arg0: i32) -> i32 {
    %c0_i32 = arith.constant 0 : i32
    %c0_i32_0 = arith.constant 0 : i32
    return %c0_i32 : i32
  }
  func.func @transform_6(%arg0: i32) -> (i32, i32) {
    %c0_i32 = arith.constant 0 : i32
    %c0_i32_0 = arith.constant 0 : i32
    return %c0_i32, %arg0 : i32, i32
  }
  func.func @transform_7(%arg0: i32) -> (i32, i32) {
    %c0_i32 = arith.constant 0 : i32
    %c0_i32_0 = arith.constant 0 : i32
    %c0_i32_1 = arith.constant 0 : i32
    return %c0_i32, %c0_i32_0 : i32, i32
  }
}

</mosaic_0001>

<llo_original>
// kernel: tpu_custom_call.1
$region0: #{tpu_custom_call.1}
  #allocation0 [shape = 'u32[]', space=smem, size = 0x4, offset = 0x4, fixed_abs, tag = 'smem constant byte address 0x4 - core index']
  #allocation1 [shape = 'u32[144,128]{1,0:T(1,128)}', space=vmem, size = 0x12000, scoped, tag = 'internal scratch']
  #allocation2 [shape = 'f32[32,384]{1,0:T(8,128)}', space=vmem, size = 0xc000, scoped, tag = 'scratch operand']
  #allocation3 [shape = 's32[1]{0}', space=sflag, size = 0x4, scoped, tag = 'scratch operand']
  #allocation4 [shape = 'f32[1,1]{1,0:T(1,128)}', space=vmem, size = 0x200, scoped, tag = 'scratch operand']
  #allocation5 [shape = 'f32[1,1]{1,0:T(1,128)}', space=vmem, size = 0x200, scoped, tag = 'scratch operand']
  #allocation6 [shape = 'f32[1,32]{1,0:T(1,128)}', space=vmem, size = 0x200, scoped, tag = 'scratch operand']
  #allocation15 [shape = 's32[]', space=sflag, size = 0x4, offset = 0, fixed_abs, tag = 'sflag constant byte address 0x0 - dummy sync flag']
  #allocation16 [shape = 's32[]', space=sflag, size = 0x4, offset = 0, fixed_abs, tag = 'sflag constant byte address 0x0 - dummy sync flag']
  #allocation17 [shape = 'u32[]', space=smem, size = 0x4, offset = 0x44, fixed_abs, tag = 'smem constant byte address 0x44 - assertion arg 0']
  #allocation18 [shape = 'u32[]', space=smem, size = 0x4, offset = 0x48, fixed_abs, tag = 'smem constant byte address 0x48 - assertion arg 1']
  %s0 = inlined_call_operand.hbm [shape: f32[8,32], index: 0, kind: input, shape index: {}]
  %s1 = inlined_call_operand.hbm [shape: f32[32,384], index: 1, kind: input, shape index: {}]
  %s2 = inlined_call_operand.vmem [shape: f32[1,384], index: 2, kind: input, shape index: {}]
  %s3 = inlined_call_operand.vmem [shape: f32[1,128], index: 3, kind: input, shape index: {}]
  %s4 = inlined_call_operand.vmem [shape: f32[1,32], index: 4, kind: input, shape index: {}]
  %s5 = inlined_call_operand.vmem [shape: f32[2], index: 5, kind: input, shape index: {}]
  %s6 = inlined_call_operand.hbm [shape: f32[1,8], index: 6, kind: output, shape index: {0}]
  %s7 = inlined_call_operand.hbm [shape: f32[1,1], index: 7, kind: output, shape index: {1}]
  %8 = xla_tuple %s6, %s7
  %s9 = sld [smem:[#allocation0]]
  $region58: #{tpu_custom_call.1} parent=0
    _
  %s11 = ssub.s32 1, %s9
  %s12 = scalar_select 0, %s11, %s9
  $region1: #{tpu_custom_call.1} parent=0
    #allocation7 [shape = 'u8[4096]{0}', space=vmem, size = 0x1000, scoped, tag = 'input window, operand 0, single buffered']
    #allocation8 [shape = 's32[1]{0}', space=sflag, size = 0x4, scoped, tag = 'scoped memory for tpu_custom_call.1']
    #allocation9 [shape = 's32[1]{0}', space=sflag, size = 0x4, scoped, tag = 'scoped memory for tpu_custom_call.1']
    #allocation10 [shape = 's32[1]{0}', space=sflag, size = 0x4, scoped, tag = 'scoped memory for tpu_custom_call.1']
    #allocation11 [shape = 'u8[512]{0}', space=smem, size = 0x200, scoped, tag = 'input window, operand 5, single buffered']
    #allocation12 [shape = 'u8[512]{0}', space=vmem, size = 0x400, scoped, tag = 'output window, operand 0, single buffered']
    #allocation13 [shape = 'u8[512]{0}', space=vmem, size = 0x400, scoped, tag = 'output window, operand 1, single buffered']
    #allocation14 [shape = 's32[1]{0}', space=sflag, size = 0x4, scoped, tag = 'scoped memory for tpu_custom_call.1']
    %13 = vsyncpa [#allocation8], 0
    %14 = vsyncpa [#allocation10], 0
    %15 = vsyncpa [#allocation9], 0
    %16 = vsyncpa [#allocation14], 0
    // Predicated region
    $region2: #{tpu_custom_call.1} parent=1 // pred_check
      _
    $region3: #{tpu_custom_call.1} parent=1 // pred_check_branch
      %18 = sbr.rel (0) target = $region5
    $region4: #{tpu_custom_call.1} parent=1 // pred_region
      %s20 = ssub.s32 128, 128
      %21 = vsyncadd [#allocation8], %s20
      %s23 = sshll.u32 [#allocation7], 4
      %s24 = int_to_ptr.vmem [resolvable:$true] %s23
      %26 = dma.hbm_to_vmem [thread:$0]  %s0, 128, %s24, [#allocation8]
    $region5: #{tpu_custom_call.1} parent=1 // pred_fallthru
      _
    // Predicated region
    $region6: #{tpu_custom_call.1} parent=1 // pred_check
      _
    $region7: #{tpu_custom_call.1} parent=1 // pred_check_branch
      %28 = sbr.rel (0) target = $region9
    $region8: #{tpu_custom_call.1} parent=1 // pred_region
      _
    $region9: #{tpu_custom_call.1} parent=1 // pred_fallthru
      _
    // Predicated region
    $region10: #{tpu_custom_call.1} parent=1 // pred_check
      _
    $region11: #{tpu_custom_call.1} parent=1 // pred_check_branch
      %30 = sbr.rel (0) target = $region13
    $region12: #{tpu_custom_call.1} parent=1 // pred_region
      _
    $region13: #{tpu_custom_call.1} parent=1 // pred_fallthru
      _
    // Predicated region
    $region14: #{tpu_custom_call.1} parent=1 // pred_check
      _
    $region15: #{tpu_custom_call.1} parent=1 // pred_check_branch
      %32 = sbr.rel (0) target = $region17
    $region16: #{tpu_custom_call.1} parent=1 // pred_region
      _
    $region17: #{tpu_custom_call.1} parent=1 // pred_fallthru
      _
    // Predicated region
    $region18: #{tpu_custom_call.1} parent=1 // pred_check
      _
    $region19: #{tpu_custom_call.1} parent=1 // pred_check_branch
      %34 = sbr.rel (0) target = $region21
    $region20: #{tpu_custom_call.1} parent=1 // pred_region
      %s36 = ssub.s32 16, 16
      %37 = vsyncadd [#allocation10], %s36
      %s39 = sshll.u32 %s5, 4
      %s40 = int_to_ptr.vmem [resolvable:$true] %s39
      %42 = dma.vmem_to_smem %s40, 16, [#allocation11], [#allocation10]
    $region21: #{tpu_custom_call.1} parent=1 // pred_fallthru
      _
    // Predicated region
    $region22: #{tpu_custom_call.1} parent=1 // pred_check
      _
    $region23: #{tpu_custom_call.1} parent=1 // pred_check_branch
      %44 = sbr.rel (0) target = $region25
    $region24: #{tpu_custom_call.1} parent=1 // pred_region
      %45 = dma.done [#allocation8], 128
    $region25: #{tpu_custom_call.1} parent=1 // pred_fallthru
      _
    // Predicated region
    $region26: #{tpu_custom_call.1} parent=1 // pred_check
      _
    $region27: #{tpu_custom_call.1} parent=1 // pred_check_branch
      %47 = sbr.rel (0) target = $region29
    $region28: #{tpu_custom_call.1} parent=1 // pred_region
      %48 = dma.done [#allocation10], 16
    $region29: #{tpu_custom_call.1} parent=1 // pred_fallthru
      _
    %49 = sfence
    %p50 = scmp.eq.s32.totalorder 0, 0
    // Predicated region
    $region30: #{tpu_custom_call.1} parent=1 // pred_check
      %p51 = pneg %p50
    $region31: #{tpu_custom_call.1} parent=1 // pred_check_branch
      %53 = sbr.rel (%p51) target = $region33
    $region32: #{tpu_custom_call.1} parent=1 // pred_region
      // Predicated region
      $region34: #{tpu_custom_call.1} parent=32 // pred_check
        _
      $region35: #{tpu_custom_call.1} parent=32 // pred_check_branch
        %55 = sbr.rel target = $region37
      $region36: #{tpu_custom_call.1} parent=32 // pred_region
        %56 = sst [smem:[#allocation17]] [#allocation16]
        %57 = sst [smem:[#allocation18]] [#allocation15]
      $region37: #{tpu_custom_call.1} parent=32 // pred_fallthru
        _
      %59 = shalt.err (0)
      %s61 = sshll.u32 [#allocation2], 4
      %s62 = int_to_ptr.vmem [resolvable:$true] %s61
      %64 = dma.hbm_to_vmem [thread:$0]  %s1, 1536, %s62, [#allocation3]
      %vm65 = vcmask 0
      %66 = vst.msk [vmem:[#allocation4] sm:$0x1] %vm65, -1e+30
      %67 = vst.msk [vmem:[#allocation5] sm:$0x1] %vm65, 0.0
      %vm68 = vcmask 253952
      %69 = vst.msk [vmem:[#allocation6] sm:$0x1] %vm68, 0.0
      %s70 = smul.u32 8, 4
      %s71 = smul.u32 %s70, 3
      %s72 = sshll.u32 %s71, 4
      %73 = dma.done [#allocation3], %s72
    $region33: #{tpu_custom_call.1} parent=1 // pred_fallthru
      _
    %v74 = vld [vmem:[#allocation7] sm:$0xff]
    %v75 = vld [vmem:[#allocation2] sm:$0xff]
    %v76 = vld [vmem:[#allocation2 + $0x8] sm:$0xff]
    %v77 = vld [vmem:[#allocation2 + $0x10] sm:$0xff]
    %v78 = vld [vmem:[#allocation2 + $0x18] sm:$0xff]
    %v79 = vld [vmem:[#allocation2 + $0x20] sm:$0xff]
    %v80 = vld [vmem:[#allocation2 + $0x28] sm:$0xff]
    %v81 = vld [vmem:[#allocation2 + $0x30] sm:$0xff]
    %v82 = vld [vmem:[#allocation2 + $0x38] sm:$0xff]
    %v83 = vld [vmem:[#allocation2 + $0x40] sm:$0xff]
    %v84 = vld [vmem:[#allocation2 + $0x48] sm:$0xff]
    %v85 = vld [vmem:[#allocation2 + $0x50] sm:$0xff]
    %v86 = vld [vmem:[#allocation2 + $0x58] sm:$0xff]
    %v87 = vld [vmem:[%s2] sm:$0x7]
    %v89 = vlaneseq
    %v90 = vshrl.u32 %v89, 7
    %v91 = vsub.s32 0, %v90
    %v92 = vrot.slane %v87, %v91
    %v93 = vlaneseq
    %v94 = vshrl.u32 %v93, 7
    %v95 = vsub.s32 1, %v94
    %v96 = vrot.slane %v87, %v95
    %v97 = vlaneseq
    %v98 = vshrl.u32 %v97, 7
    %v99 = vsub.s32 2, %v98
    %v100 = vrot.slane %v87, %v99
    %vm104 = vcmask 261120
    %v106 = vsel %vm104, %v74, 0
    %108 = vmatprep.subr.mxu0 %v76
    %109 = vmatpush1.msra.mxu0 %v75
    %110 = vmatprep.subr.mxu0 %v79
    %111 = vmatpush1.msra.mxu0 %v78
    %112 = vmatprep.subr.mxu0 %v82
    %113 = vmatpush1.msra.mxu0 %v81
    %114 = vmatprep.subr.mxu0 %v85
    %115 = vmatpush1.msra.mxu0 %v84
    %116 = vmatprep.subr.mxu0 0.0
    %117 = vmatpush1.msra.mxu0 0.0
    %118 = vmatprep.subr.mxu0 0.0
    %119 = vmatpush1.msra.mxu0 0.0
    %120 = vmatprep.subr.mxu0 0.0
    %121 = vmatpush1.msra.mxu0 0.0
    %122 = vmatprep.subr.mxu0 0.0
    %123 = vmatpush1.msra.mxu0 0.0
    %124 = vmatprep.subr.mxu0 0.0
    %125 = vmatpush1.msra.mxu0 0.0
    %126 = vmatprep.subr.mxu0 0.0
    %127 = vmatpush1.msra.mxu0 0.0
    %128 = vmatprep.subr.mxu0 0.0
    %129 = vmatpush1.msra.mxu0 0.0
    %130 = vmatprep.subr.mxu0 0.0
    %131 = vmatpush1.msra.mxu0 0.0
    %132 = vmatprep.subr.mxu0 0.0
    %133 = vmatpush1.msra.mxu0 0.0
    %134 = vmatprep.subr.mxu0 0.0
    %135 = vmatpush1.msra.mxu0 0.0
    %136 = vmatprep.subr.mxu0 0.0
    %137 = vmatpush1.msra.mxu0 0.0
    %138 = vmatprep.subr.mxu0 0.0
    %139 = vmatpush1.msra.mxu0 0.0
    %140 = vmatprep.subr.mxu0 0.0
    %141 = vmatpush1.msra.mxu0 0.0
    %142 = vmatprep.subr.mxu0 0.0
    %143 = vmatpush1.msra.mxu0 0.0
    %144 = vmatprep.subr.mxu0 0.0
    %145 = vmatpush1.msra.mxu0 0.0
    %146 = vmatprep.subr.mxu0 0.0
    %147 = vmatpush1.msra.mxu0 0.0
    %148 = vmatprep.subr.mxu0 0.0
    %149 = vmatpush1.msra.mxu0 0.0
    %150 = vmatprep.subr.mxu0 0.0
    %151 = vmatpush1.msra.mxu0 0.0
    %152 = vmatprep.subr.mxu0 0.0
    %153 = vmatpush1.msra.mxu0 0.0
    %154 = vmatprep.subr.mxu0 0.0
    %155 = vmatpush1.msra.mxu0 0.0
    %156 = vmatprep.subr.mxu0 0.0
    %157 = vmatpush1.msra.mxu0 0.0
    %158 = vmatprep.subr.mxu0 0.0
    %159 = vmatpush1.msra.mxu0 0.0
    %160 = vmatprep.subr.mxu0 0.0
    %161 = vmatpush1.msra.mxu0 0.0
    %162 = vmatprep.subr.mxu0 0.0
    %163 = vmatpush1.msra.mxu0 0.0
    %164 = vmatprep.subr.mxu0 0.0
    %165 = vmatpush1.msra.mxu0 0.0
    %166 = vmatprep.subr.mxu0 0.0
    %167 = vmatpush1.msra.mxu0 0.0
    %168 = vmatprep.subr.mxu0 0.0
    %169 = vmatpush1.msra.mxu0 0.0
    %170 = vmatprep.subr.mxu0 0.0
    %171 = vmatpush1.msra.mxu0 0.0
    %172 = vmatprep.mubr.f32.mxu0 0.0
    %173 = vmatmul.mubr.f32.gmra.mrb[0].mxu0 %v106
    %v174 = vpop.f32.mrb[0].mxu0
    %v175 = vadd.f32 %v92, %v174
    %v176 = vpop.f32.mrb[0].mxu0
    %v177 = vadd.f32 %v96, %v176
    %178 = vdwg.mxu0
    %179 = vmatprep.subr.mxu0 0.0
    %180 = vmatpush1.msra.mxu0 %v77
    %181 = vmatprep.subr.mxu0 0.0
    %182 = vmatpush1.msra.mxu0 %v80
    %183 = vmatprep.subr.mxu0 0.0
    %184 = vmatpush1.msra.mxu0 %v83
    %185 = vmatprep.subr.mxu0 0.0
    %186 = vmatpush1.msra.mxu0 %v86
    %187 = vmatprep.subr.mxu0 0.0
    %188 = vmatpush1.msra.mxu0 0.0
    %189 = vmatprep.subr.mxu0 0.0
    %190 = vmatpush1.msra.mxu0 0.0
    %191 = vmatprep.subr.mxu0 0.0
    %192 = vmatpush1.msra.mxu0 0.0
    %193 = vmatprep.subr.mxu0 0.0
    %194 = vmatpush1.msra.mxu0 0.0
    %195 = vmatprep.subr.mxu0 0.0
    %196 = vmatpush1.msra.mxu0 0.0
    %197 = vmatprep.subr.mxu0 0.0
    %198 = vmatpush1.msra.mxu0 0.0
    %199 = vmatprep.subr.mxu0 0.0
    %200 = vmatpush1.msra.mxu0 0.0
    %201 = vmatprep.subr.mxu0 0.0
    %202 = vmatpush1.msra.mxu0 0.0
    %203 = vmatprep.subr.mxu0 0.0
    %204 = vmatpush1.msra.mxu0 0.0
    %205 = vmatprep.subr.mxu0 0.0
    %206 = vmatpush1.msra.mxu0 0.0
    %207 = vmatprep.subr.mxu0 0.0
    %208 = vmatpush1.msra.mxu0 0.0
    %209 = vmatprep.subr.mxu0 0.0
    %210 = vmatpush1.msra.mxu0 0.0
    %211 = vmatprep.subr.mxu0 0.0
    %212 = vmatpush1.msra.mxu0 0.0
    %213 = vmatprep.subr.mxu0 0.0
    %214 = vmatpush1.msra.mxu0 0.0
    %215 = vmatprep.subr.mxu0 0.0
    %216 = vmatpush1.msra.mxu0 0.0
    %217 = vmatprep.subr.mxu0 0.0
    %218 = vmatpush1.msra.mxu0 0.0
    %219 = vmatprep.subr.mxu0 0.0
    %220 = vmatpush1.msra.mxu0 0.0
    %221 = vmatprep.subr.mxu0 0.0
    %222 = vmatpush1.msra.mxu0 0.0
    %223 = vmatprep.subr.mxu0 0.0
    %224 = vmatpush1.msra.mxu0 0.0
    %225 = vmatprep.subr.mxu0 0.0
    %226 = vmatpush1.msra.mxu0 0.0
    %227 = vmatprep.subr.mxu0 0.0
    %228 = vmatpush1.msra.mxu0 0.0
    %229 = vmatprep.subr.mxu0 0.0
    %230 = vmatpush1.msra.mxu0 0.0
    %231 = vmatprep.subr.mxu0 0.0
    %232 = vmatpush1.msra.mxu0 0.0
    %233 = vmatprep.subr.mxu0 0.0
    %234 = vmatpush1.msra.mxu0 0.0
    %235 = vmatprep.subr.mxu0 0.0
    %236 = vmatpush1.msra.mxu0 0.0
    %237 = vmatprep.subr.mxu0 0.0
    %238 = vmatpush1.msra.mxu0 0.0
    %239 = vmatprep.subr.mxu0 0.0
    %240 = vmatpush1.msra.mxu0 0.0
    %241 = vmatprep.subr.mxu0 0.0
    %242 = vmatpush1.msra.mxu0 0.0
    %243 = vmatprep.mubr.f32.mxu0 0.0
    %244 = vmatmul.mubr.f32.gmra.mrb[0].mxu0 %v106
    %v245 = vpop.f32.mrb[0].mxu0
    %v246 = vadd.f32 %v100, %v245
    %v247 = vpop.f32.mrb[0].mxu0
    %248 = vdwg.mxu0
    %v249 = vtanh.pop %v175
    %v250 = vxor.u32 %v177, 2147483648
    %v251 = vmul.f32 %v250, 1.442695
    %v252 = vpow.pop %v251
    %v253 = vadd.f32 %v252, 1.0
    %v254 = vrcp.pop %v253
    %v255 = vmul.f32 1.0, %v254
    %v256 = vmul.f32 %v249, %v255
    %v257 = vld [vmem:[%s3] sm:$0x1]
    %v259 = vlaneseq
    %v260 = vshrl.u32 %v259, 7
    %v261 = vsub.s32 0, %v260
    %v262 = vrot.slane %v257, %v261
    %v264 = vmul.f32 %v256, %v262
    %265 = vadd.xlane.f32.xlu0 %v264
    %v266 = vpop.xlane.xlu0 %265
    %s267 = sld [smem:[#allocation11]]
    %v268 = vstv %s267
    %v269 = vadd.f32 %v266, %v268
    %vm270 = vcmask 7168
    %v271 = vsel %vm270, %v246, %v269
    %272 = vxpose.xlu0.b32.start [1/16] %v271, 128
    %273 = vxpose.xlu0.b32.cont [2/16] 0.0, 128
    %274 = vxpose.xlu0.b32.cont [3/16] 0.0, 128
    %275 = vxpose.xlu0.b32.cont [4/16] 0.0, 128
    %276 = vxpose.xlu0.b32.cont [5/16] 0.0, 128
    %277 = vxpose.xlu0.b32.cont [6/16] 0.0, 128
    %278 = vxpose.xlu0.b32.cont [7/16] 0.0, 128
    %279 = vxpose.xlu0.b32.cont [8/16] 0.0, 128
    %280 = vxpose.xlu0.b32.cont [9/16] 0.0, 128
    %281 = vxpose.xlu0.b32.cont [10/16] 0.0, 128
    %282 = vxpose.xlu0.b32.cont [11/16] 0.0, 128
    %283 = vxpose.xlu0.b32.cont [12/16] 0.0, 128
    %284 = vxpose.xlu0.b32.cont [13/16] 0.0, 128
    %285 = vxpose.xlu0.b32.cont [14/16] 0.0, 128
    %286 = vxpose.xlu0.b32.cont [15/16] 0.0, 128
    %287 = vxpose.xlu0.b32.end [16/16] 0.0, 128
    %v288 = vpop.trf.xlu0
    %v289 = vpop.trf.xlu0
    %v290 = vpop.trf.xlu0
    %v291 = vpop.trf.xlu0
    %v292 = vpop.trf.xlu0
    %v293 = vpop.trf.xlu0
    %v294 = vpop.trf.xlu0
    %v295 = vpop.trf.xlu0
    %v296 = vpop.trf.xlu0
    %v297 = vpop.trf.xlu0
    %v298 = vpop.trf.xlu0
    %v299 = vpop.trf.xlu0
    %v300 = vpop.trf.xlu0
    %v301 = vpop.trf.xlu0
    %v302 = vpop.trf.xlu0
    %v303 = vpop.trf.xlu0
    %vm304 = vcmask 57344
    %305 = vst.msk [vmem:[#allocation12] sm:$0x1] %vm304, %v288
    %v306 = vlaneseq
    %v307 = vand.u32 %v306, 127
    %s308 = smul.u32 0, 8
    %v309 = vstv %s308
    %v310 = vadd.s32 %v309, %v307
    %vm311 = vcmp.lt.s32.totalorder %v310, 8
    %v312 = vsel %vm311, %v288, -1e+30
    %v313 = vld [vmem:[#allocation4] sm:$0x1]
    %vm314 = vcmask 58369
    %v315 = vsel %vm314, %v312, -inf
    %316 = vmax.xlane.f32.xlu0 %v315
    %v317 = vpop.xlane.xlu0 %316
    %v319 = vlaneseq
    %v320 = vshrl.u32 %v319, 7
    %v321 = vsub.s32 1, %v320
    %v322 = vrot.slane %v317, %v321
    %v324 = vmax.f32 %v313, %v322
    %v325 = vsub.f32 %v313, %v324
    %v326 = vmul.f32 %v325, 1.442695
    %v327 = vpow.pop %v326
    %329 = vset.pattern.permute.xlu0 0
    %330 = vperm.xlu0 %329, %v324
    %v331 = vpop.permute.xlu0 %330
    %v333 = vlaneseq
    %v334 = vshrl.u32 %v333, 7
    %v335 = vsub.s32 0, %v334
    %v336 = vrot.slane %v331, %v335
    %v337 = vsub.f32 %v312, %v336
    %v338 = vmul.f32 %v337, 1.442695
    %v339 = vpow.pop %v338
    %v340 = vld [vmem:[#allocation5] sm:$0x1]
    %v341 = vmul.f32 %v327, %v340
    %v342 = vsel %vm314, %v339, 0.0
    %343 = vadd.xlane.f32.xlu0 %v342
    %v344 = vpop.xlane.xlu0 %343
    %v346 = vlaneseq
    %v347 = vshrl.u32 %v346, 7
    %v348 = vsub.s32 1, %v347
    %v349 = vrot.slane %v344, %v348
    %v351 = vadd.f32 %v341, %v349
    %vm352 = vcmask 0
    %353 = vst.msk [vmem:[#allocation5] sm:$0x1] %vm352, %v351
    %v354 = vld [vmem:[#allocation6] sm:$0x1]
    %356 = vset.pattern.permute.xlu0 0
    %357 = vperm.xlu0 %356, %v327
    %v358 = vpop.permute.xlu0 %357
    %v360 = vlaneseq
    %v361 = vshrl.u32 %v360, 7
    %v362 = vsub.s32 0, %v361
    %v363 = vrot.slane %v358, %v362
    %v364 = vmul.f32 %v363, %v354
    %v366 = vrot.slane %v339, 1
    %vm367 = vcmask 64512
    %v368 = vsel %vm367, %v366, 0
    %370 = vmatprep.subr.mxu0 0.0
    %371 = vmatpush1.msra.mxu0 %v74
    %372 = vmatprep.subr.mxu0 0.0
    %373 = vmatpush1.msra.mxu0 0.0
    %374 = vmatprep.subr.mxu0 0.0
    %375 = vmatpush1.msra.mxu0 0.0
    %376 = vmatprep.subr.mxu0 0.0
    %377 = vmatpush1.msra.mxu0 0.0
    %378 = vmatprep.subr.mxu0 0.0
    %379 = vmatpush1.msra.mxu0 0.0
    %380 = vmatprep.subr.mxu0 0.0
    %381 = vmatpush1.msra.mxu0 0.0
    %382 = vmatprep.subr.mxu0 0.0
    %383 = vmatpush1.msra.mxu0 0.0
    %384 = vmatprep.subr.mxu0 0.0
    %385 = vmatpush1.msra.mxu0 0.0
    %386 = vmatprep.subr.mxu0 0.0
    %387 = vmatpush1.msra.mxu0 0.0
    %388 = vmatprep.subr.mxu0 0.0
    %389 = vmatpush1.msra.mxu0 0.0
    %390 = vmatprep.subr.mxu0 0.0
    %391 = vmatpush1.msra.mxu0 0.0
    %392 = vmatprep.subr.mxu0 0.0
    %393 = vmatpush1.msra.mxu0 0.0
    %394 = vmatprep.subr.mxu0 0.0
    %395 = vmatpush1.msra.mxu0 0.0
    %396 = vmatprep.subr.mxu0 0.0
    %397 = vmatpush1.msra.mxu0 0.0
    %398 = vmatprep.subr.mxu0 0.0
    %399 = vmatpush1.msra.mxu0 0.0
    %400 = vmatprep.subr.mxu0 0.0
    %401 = vmatpush1.msra.mxu0 0.0
    %402 = vmatprep.subr.mxu0 0.0
    %403 = vmatpush1.msra.mxu0 0.0
    %404 = vmatprep.subr.mxu0 0.0
    %405 = vmatpush1.msra.mxu0 0.0
    %406 = vmatprep.subr.mxu0 0.0
    %407 = vmatpush1.msra.mxu0 0.0
    %408 = vmatprep.subr.mxu0 0.0
    %409 = vmatpush1.msra.mxu0 0.0
    %410 = vmatprep.subr.mxu0 0.0
    %411 = vmatpush1.msra.mxu0 0.0
    %412 = vmatprep.subr.mxu0 0.0
    %413 = vmatpush1.msra.mxu0 0.0
    %414 = vmatprep.subr.mxu0 0.0
    %415 = vmatpush1.msra.mxu0 0.0
    %416 = vmatprep.subr.mxu0 0.0
    %417 = vmatpush1.msra.mxu0 0.0
    %418 = vmatprep.subr.mxu0 0.0
    %419 = vmatpush1.msra.mxu0 0.0
    %420 = vmatprep.subr.mxu0 0.0
    %421 = vmatpush1.msra.mxu0 0.0
    %422 = vmatprep.subr.mxu0 0.0
    %423 = vmatpush1.msra.mxu0 0.0
    %424 = vmatprep.subr.mxu0 0.0
    %425 = vmatpush1.msra.mxu0 0.0
    %426 = vmatprep.subr.mxu0 0.0
    %427 = vmatpush1.msra.mxu0 0.0
    %428 = vmatprep.subr.mxu0 0.0
    %429 = vmatpush1.msra.mxu0 0.0
    %430 = vmatprep.subr.mxu0 0.0
    %431 = vmatpush1.msra.mxu0 0.0
    %432 = vmatprep.subr.mxu0 0.0
    %433 = vmatpush1.msra.mxu0 0.0
    %434 = vmatprep.mubr.f32.mxu0 0.0
    %435 = vmatmul.mubr.f32.gmra.mrb[0].mxu0 %v368
    %v436 = vpop.f32.mrb[0].mxu0
    %v437 = vadd.f32 0.0, %v436
    %v438 = vpop.f32.mrb[0].mxu0
    %439 = vdwg.mxu0
    %v440 = vadd.f32 %v364, %v437
    %vm441 = vcmask 253952
    %442 = vst.msk [vmem:[#allocation6] sm:$0x1] %vm441, %v440
    %443 = vst.msk [vmem:[#allocation4] sm:$0x1] %vm352, %v324
    // Predicated region
    $region38: #{tpu_custom_call.1} parent=1 // pred_check
      %p444 = pneg %p50
    $region39: #{tpu_custom_call.1} parent=1 // pred_check_branch
      %446 = sbr.rel (%p444) target = $region41
    $region40: #{tpu_custom_call.1} parent=1 // pred_region
      %v447 = vld [vmem:[#allocation6] sm:$0x1]
      %v448 = vld [vmem:[#allocation5] sm:$0x1]
      %450 = vset.pattern.permute.xlu0 0
      %451 = vperm.xlu0 %450, %v448
      %v452 = vpop.permute.xlu0 %451
      %v454 = vlaneseq
      %v455 = vshrl.u32 %v454, 7
      %v456 = vsub.s32 0, %v455
      %v457 = vrot.slane %v452, %v456
      %v458 = vrcp.pop %v457
      %v459 = vmul.f32 %v447, %v458
      %v460 = vld [vmem:[%s4] sm:$0x1]
      %v461 = vmul.f32 %v459, %v460
      %v462 = vsel %vm441, %v461, 0.0
      %463 = vadd.xlane.f32.xlu0 %v462
      %v464 = vpop.xlane.xlu0 %463
      %s465 = sld [smem:[#allocation11 + $0x1]]
      %v466 = vstv %s465
      %v467 = vadd.f32 %v464, %v466
      %468 = vst.msk [vmem:[#allocation13] sm:$0x1] %vm352, %v467
    $region41: #{tpu_custom_call.1} parent=1 // pred_fallthru
      _
    // Predicated region
    $region42: #{tpu_custom_call.1} parent=1 // pred_check
      _
    $region43: #{tpu_custom_call.1} parent=1 // pred_check_branch
      %470 = sbr.rel (0) target = $region45
    $region44: #{tpu_custom_call.1} parent=1 // pred_region
      %s472 = ssub.s32 16, 16
      %473 = vsyncadd [#allocation9], %s472
      %s475 = sshll.u32 [#allocation12], 4
      %s476 = int_to_ptr.vmem [resolvable:$true] %s475
      %478 = dma.vmem_to_hbm [thread:$0]  %s476, 16, %s6, [#allocation9]
    $region45: #{tpu_custom_call.1} parent=1 // pred_fallthru
      _
    // Predicated region
    $region46: #{tpu_custom_call.1} parent=1 // pred_check
      _
    $region47: #{tpu_custom_call.1} parent=1 // pred_check_branch
      %480 = sbr.rel (0) target = $region49
    $region48: #{tpu_custom_call.1} parent=1 // pred_region
      %s482 = ssub.s32 16, 16
      %483 = vsyncadd [#allocation14], %s482
      %s485 = sshll.u32 [#allocation13], 4
      %s486 = int_to_ptr.vmem [resolvable:$true] %s485
      %488 = dma.vmem_to_hbm [thread:$0]  %s486, 16, %s7, [#allocation14]
    $region49: #{tpu_custom_call.1} parent=1 // pred_fallthru
      _
    // Predicated region
    $region50: #{tpu_custom_call.1} parent=1 // pred_check
      _
    $region51: #{tpu_custom_call.1} parent=1 // pred_check_branch
      %490 = sbr.rel (0) target = $region53
    $region52: #{tpu_custom_call.1} parent=1 // pred_region
      %491 = dma.done [#allocation9], 16
    $region53: #{tpu_custom_call.1} parent=1 // pred_fallthru
      _
    // Predicated region
    $region54: #{tpu_custom_call.1} parent=1 // pred_check
      _
    $region55: #{tpu_custom_call.1} parent=1 // pred_check_branch
      %493 = sbr.rel (0) target = $region57
    $region56: #{tpu_custom_call.1} parent=1 // pred_region
      %494 = dma.done [#allocation14], 16
    $region57: #{tpu_custom_call.1} parent=1 // pred_fallthru
      _
    %495 = vsyncpa [#allocation8], 1
    %496 = vsyncpa [#allocation9], 1
    %497 = vsyncpa [#allocation14], 1
    %498 = vsyncpa [#allocation10], 1
  %499 = vsyncmov [#allocation3]
  %s500 = vpop.sfrf %499
  %p501 = scmp.eq.s32.totalorder %s500, 0
  %p502 = pneg %p501
  %504 = shalt.err (%p502)

</llo_original>
